<compile_context>
chip_gen: v7x
topology: tpu7x:2x2x1
jax: 0.10.0
libtpu: 0.0.40
codegen_flags: <defaults>
</compile_context>

<pallas_src>
import functools

import jax
import jax.numpy as jnp
from jax.experimental import pallas as pl
from jax.experimental.pallas import tpu as pltpu


# ---------------------------------------------------------------------------
# Tile selection
# ---------------------------------------------------------------------------
def _pick_tile(dim, cap, align):
    """Largest `align`-multiple tile <= cap that divides dim (or dim itself)."""
    if dim <= cap:
        return dim
    start = cap - cap % align
    for t in range(start, 0, -align):
        if dim % t == 0:
            return t
    # TODO(synk): pad ragged dims instead of falling back to a full-size block.
    return dim


# ---------------------------------------------------------------------------
# Pallas kernel: tiled SwiGLU experts + weighted accumulation
# ---------------------------------------------------------------------------
def _moe_kernel(counts_ref,                      # SMEM (E,) int32  (scalar prefetch)
                x_ref, pw_ref, w1_ref, w3_ref, w2_ref,
                out_ref, acc_ref):
    e = pl.program_id(1)                         # expert (reduction axis)
    f = pl.program_id(2)                         # F tile (reduction axis)
    n_e = pl.num_programs(1)
    n_f = pl.num_programs(2)

    @pl.when((e == 0) & (f == 0))
    def _():
        acc_ref[...] = jnp.zeros_like(acc_ref)

    # Skip all MXU work for experts that received no tokens.
    @pl.when(counts_ref[e] > 0)
    def _():
        x = x_ref[...]                                           # (TM, H)
        # NT matmuls: contract last axis of both operands (no .T / vxpose).
        dn = (((1,), (1,)), ((), ()))
        gate = jax.lax.dot_general(x, w1_ref[...], dn,
                                   preferred_element_type=jnp.float32)   # (TM, TF)
        up = jax.lax.dot_general(x, w3_ref[...], dn,
                                 preferred_element_type=jnp.float32)     # (TM, TF)
        h = (gate * jax.nn.sigmoid(gate)) * up                           # silu * up
        y = jax.lax.dot_general(h.astype(x.dtype), w2_ref[...], dn,
                                preferred_element_type=jnp.float32)      # (TM, H)

        # Routing weight of expert e for every token in this tile: column e of
        # the small dense (TM, E) table (lane-resident, no per-expert DMA).
        pw = pw_ref[...].astype(jnp.float32)                             # (TM, E)
        col = jax.lax.broadcasted_iota(jnp.int32, pw.shape, 1)
        w_e = jnp.sum(jnp.where(col == e, pw, 0.0), axis=1, keepdims=True)  # (TM, 1)

        acc_ref[...] += y * w_e

    @pl.when((e == n_e - 1) & (f == n_f - 1))
    def _():
        out_ref[...] = acc_ref[...].astype(out_ref.dtype)


# ---------------------------------------------------------------------------
# Wrapper
# ---------------------------------------------------------------------------
def moe_experts_pallas(x, w1, w3, w2, padded_weights, counts,
                       *, tm_cap=256, tf_cap=512, vmem_limit_bytes=None):
    """x: (T,H); w1/w3: (E,F,H); w2: (E,H,F); padded_weights: (T,E); counts: (E,)."""
    T, H = x.shape
    E, F, _ = w1.shape

    # Tile sizes: TM (tokens) sublane-aligned, TF (intermediate) lane-aligned.
    # tm_cap/tf_cap are sized for ~20-25 MiB working set at Mixtral scale
    # (fits v7x's 64 MiB VMEM); on v6e/v5e raise tf_cap (+ vmem_limit_bytes).
    TM = _pick_tile(T, tm_cap, 8)
    TF = _pick_tile(F, tf_cap, 128)
    grid = (T // TM, E, F // TF)

    compiler_kwargs = dict(dimension_semantics=("parallel", "arbitrary", "arbitrary"))
    if vmem_limit_bytes is not None:
        compiler_kwargs["vmem_limit_bytes"] = vmem_limit_bytes

    return pl.pallas_call(
        _moe_kernel,
        out_shape=jax.ShapeDtypeStruct((T, H), x.dtype),
        grid_spec=pltpu.PrefetchScalarGridSpec(
            num_scalar_prefetch=1,                     # counts -> SMEM
            grid=grid,
            in_specs=[
                pl.BlockSpec((TM, H), lambda t, e, f, c: (t, 0)),                    # x
                pl.BlockSpec((TM, E), lambda t, e, f, c: (t, 0)),                    # pw
                pl.BlockSpec((pl.Squeezed(), TF, H), lambda t, e, f, c: (e, f, 0)),  # w1[e]
                pl.BlockSpec((pl.Squeezed(), TF, H), lambda t, e, f, c: (e, f, 0)),  # w3[e]
                pl.BlockSpec((pl.Squeezed(), H, TF), lambda t, e, f, c: (e, 0, f)),  # w2[e]
            ],
            out_specs=pl.BlockSpec((TM, H), lambda t, e, f, c: (t, 0)),
            scratch_shapes=[pltpu.VMEM((TM, H), jnp.float32)],
        ),
        compiler_params=pltpu.CompilerParams(**compiler_kwargs),
    )(counts, x, padded_weights, w1, w3, w2)


def mixtral_sparse_moe_block(hidden_states, gate_w, w1, w3, w2, top_k):
    """Returns (final_hidden_states (B,S,H), router_logits (B*S, E))."""
    B, S, H = hidden_states.shape
    E = gate_w.shape[0]
    x = hidden_states.reshape(-1, H)                           # (T, H)
    T = x.shape[0]

    # Router: tiny (T,H)@(H,E) matmul with E << 128 output lanes -> let XLA do
    # it (a Pallas kernel here is pure masked-store overhead).
    logits_f32 = jnp.dot(x, gate_w.T, preferred_element_type=jnp.float32)
    router_logits = logits_f32.astype(hidden_states.dtype)     # nn.Linear output dtype

    # calculate_routing_tensors: softmax(f32) -> top-k -> renorm -> cast.
    probs = jax.nn.softmax(router_logits.astype(jnp.float32), axis=-1)
    top_w, top_i = jax.lax.top_k(probs, top_k)                 # (T, k)
    top_w = top_w / jnp.sum(top_w, axis=-1, keepdims=True)
    top_w = top_w.astype(hidden_states.dtype)

    # Dense (T, E) routing table (kept VMEM-resident in the kernel) + per-expert
    # token counts so empty experts are skipped inside the kernel.
    padded = jnp.zeros((T, E), hidden_states.dtype)
    padded = padded.at[jnp.arange(T)[:, None], top_i].set(top_w)
    counts = jnp.bincount(top_i.reshape(-1), length=E).astype(jnp.int32)

    out = moe_experts_pallas(x, w1, w3, w2, padded, counts)    # (T, H)
    return out.reshape(B, S, H), router_logits


# ---------------------------------------------------------------------------
# Main
# ---------------------------------------------------------------------------
if __name__ == "__main__":
    # Small synthetic config (consistent with MixtralConfig fields).
    B, S = 2, 8          # batch, sequence
    H = 32               # hidden_size
    F = 64               # intermediate_size
    E = 4                # num_local_experts
    TOP_K = 2            # num_experts_per_tok
    dtype = jnp.float32

    key = jax.random.PRNGKey(0)
    k_x, k_g, k_w1, k_w3, k_w2 = jax.random.split(key, 5)

    hidden_states = jax.random.normal(k_x, (B, S, H), dtype)
    gate_w = jax.random.normal(k_g, (E, H), dtype) * 0.05
    w1 = jax.random.normal(k_w1, (E, F, H), dtype) * 0.05
    w3 = jax.random.normal(k_w3, (E, F, H), dtype) * 0.05
    w2 = jax.random.normal(k_w2, (E, H, F), dtype) * 0.05

    fwd = jax.jit(functools.partial(mixtral_sparse_moe_block, top_k=TOP_K))
    out, router_logits = fwd(hidden_states, gate_w, w1, w3, w2)
    jax.block_until_ready((out, router_logits))

    # Pure-JAX reference check.
    x = hidden_states.reshape(-1, H)
    logits_ref = x @ gate_w.T
    probs = jax.nn.softmax(logits_ref.astype(jnp.float32), axis=-1)
    tw, ti = jax.lax.top_k(probs, TOP_K)
    tw = (tw / tw.sum(-1, keepdims=True)).astype(dtype)
    pad = jnp.zeros((x.shape[0], E), dtype).at[jnp.arange(x.shape[0])[:, None], ti].set(tw)
    ref = jnp.zeros_like(x)
    for e in range(E):
        g = x @ w1[e].T
        y = ((g * jax.nn.sigmoid(g)) * (x @ w3[e].T)) @ w2[e].T
        ref = ref + y * pad[:, e:e + 1]
    ref = ref.reshape(B, S, H)

    assert jnp.allclose(out, ref, atol=1e-4, rtol=1e-4), "MoE output mismatch"
    assert jnp.allclose(router_logits, logits_ref, atol=1e-4, rtol=1e-4), "logits mismatch"

    print("KERNEL_OK")
</pallas_src>

<mosaic_0001>
module attributes {stable_mosaic.version = 11 : i64} {
  func.func private @main(%arg0: i32) attributes {dimension_semantics = [#tpu.dimension_semantics<core_parallel>], iteration_bounds = array<i64: 2>, tpu.core_type = #tpu.core_type<sc_scalar_subcore>, window_params = []} {
    return
  }
}

module attributes {stable_mosaic.version = 11 : i64} {
  func.func private @main(%arg0: i32) attributes {dimension_semantics = [#tpu.dimension_semantics<core_parallel>], iteration_bounds = array<i64: 2>, tpu.core_type = #tpu.core_type<sc_scalar_subcore>, window_params = []} {
    return
  }
}

module attributes {stable_mosaic.version = 11 : i64} {
  func.func @_moe_kernel(%arg0: i32, %arg1: i32, %arg2: i32, %arg3: memref<4xi32, #tpu.memory_space<smem>>, %arg4: memref<16x32xf32, #tpu.memory_space<vmem>>, %arg5: memref<16x4xf32, #tpu.memory_space<vmem>>, %arg6: memref<1x64x32xf32, #tpu.memory_space<vmem>>, %arg7: memref<1x64x32xf32, #tpu.memory_space<vmem>>, %arg8: memref<1x32x64xf32, #tpu.memory_space<vmem>>, %arg9: memref<16x32xf32, #tpu.memory_space<vmem>>, %arg10: memref<16x32xf32, #tpu.memory_space<vmem>>) attributes {dimension_semantics = [#tpu.dimension_semantics<parallel>, #tpu.dimension_semantics<arbitrary>, #tpu.dimension_semantics<arbitrary>], iteration_bounds = array<i64: 1, 4, 1>, scalar_prefetch = 1 : i64, scratch_operands = 1 : i64, tpu.core_type = #tpu.core_type<tc>, window_params = [{transform_indices = @transform_0, window_bounds = array<i64: 16, 32>}, {transform_indices = @transform_1, window_bounds = array<i64: 16, 4>}, {transform_indices = @transform_2, window_bounds = array<i64: 1, 64, 32>}, {transform_indices = @transform_3, window_bounds = array<i64: 1, 64, 32>}, {transform_indices = @transform_4, window_bounds = array<i64: 1, 32, 64>}, {transform_indices = @transform_5, window_bounds = array<i64: 16, 32>}]} {
    %c0_i32 = arith.constant 0 : i32
    %0 = arith.cmpi eq, %arg1, %c0_i32 : i32
    %c0_i32_0 = arith.constant 0 : i32
    %1 = arith.cmpi eq, %arg2, %c0_i32_0 : i32
    %2 = arith.andi %0, %1 : i1
    %3 = arith.extui %2 : i1 to i32
    %c0_i32_1 = arith.constant 0 : i32
    %4 = arith.cmpi ne, %3, %c0_i32_1 : i32
    scf.if %4 {
      %cst = arith.constant 0.000000e+00 : f32
      %15 = vector.broadcast %cst : f32 to vector<16x32xf32>
      %c0 = arith.constant 0 : index
      %c0_6 = arith.constant 0 : index
      %16 = vector.load %arg10[%c0, %c0_6] : memref<16x32xf32, #tpu.memory_space<vmem>>, vector<16x32xf32>
      tpu.vector_store %arg10[%c0, %c0_6], %15 {strides = array<i32>} : memref<16x32xf32, #tpu.memory_space<vmem>>, vector<16x32xf32>,
    } else {
    }
    %5 = arith.index_cast %arg1 : i32 to index
    %6 = memref.load %arg3[%5] : memref<4xi32, #tpu.memory_space<smem>>
    %c0_i32_2 = arith.constant 0 : i32
    %7 = arith.cmpi sgt, %6, %c0_i32_2 : i32
    %8 = arith.extui %7 : i1 to i32
    %c0_i32_3 = arith.constant 0 : i32
    %9 = arith.cmpi ne, %8, %c0_i32_3 : i32
    scf.if %9 {
      %c0 = arith.constant 0 : index
      %c0_6 = arith.constant 0 : index
      %15 = vector.load %arg4[%c0, %c0_6] : memref<16x32xf32, #tpu.memory_space<vmem>>, vector<16x32xf32>
      %c0_7 = arith.constant 0 : index
      %c0_8 = arith.constant 0 : index
      %c0_9 = arith.constant 0 : index
      %16 = vector.load %arg6[%c0_7, %c0_8, %c0_9] : memref<1x64x32xf32, #tpu.memory_space<vmem>>, vector<1x64x32xf32>
      %17 = vector.shape_cast %16 : vector<1x64x32xf32> to vector<64x32xf32>
      %cst = arith.constant dense<0.000000e+00> : vector<16x64xf32>
      %18 = tpu.matmul %15, %17, %cst {dimension_numbers = #tpu.dot_dimension_numbers<[1], [1], [0], [0], [0, 0, 1, 0], [], []>} : vector<16x32xf32>, vector<64x32xf32>, vector<16x64xf32> -> vector<16x64xf32>
      %c0_10 = arith.constant 0 : index
      %c0_11 = arith.constant 0 : index
      %c0_12 = arith.constant 0 : index
      %19 = vector.load %arg7[%c0_10, %c0_11, %c0_12] : memref<1x64x32xf32, #tpu.memory_space<vmem>>, vector<1x64x32xf32>
      %20 = vector.shape_cast %19 : vector<1x64x32xf32> to vector<64x32xf32>
      %cst_13 = arith.constant dense<0.000000e+00> : vector<16x64xf32>
      %21 = tpu.matmul %15, %20, %cst_13 {dimension_numbers = #tpu.dot_dimension_numbers<[1], [1], [0], [0], [0, 0, 1, 0], [], []>} : vector<16x32xf32>, vector<64x32xf32>, vector<16x64xf32> -> vector<16x64xf32>
      %22 = arith.negf %18 : vector<16x64xf32>
      %23 = math.exp %22 : vector<16x64xf32>
      %cst_14 = arith.constant 1.000000e+00 : f32
      %24 = vector.broadcast %cst_14 : f32 to vector<16x64xf32>
      %25 = arith.addf %24, %23 : vector<16x64xf32>
      %26 = arith.divf %24, %25 : vector<16x64xf32>
      %27 = arith.mulf %18, %26 : vector<16x64xf32>
      %28 = arith.mulf %27, %21 : vector<16x64xf32>
      %c0_15 = arith.constant 0 : index
      %c0_16 = arith.constant 0 : index
      %c0_17 = arith.constant 0 : index
      %29 = vector.load %arg8[%c0_15, %c0_16, %c0_17] : memref<1x32x64xf32, #tpu.memory_space<vmem>>, vector<1x32x64xf32>
      %30 = vector.shape_cast %29 : vector<1x32x64xf32> to vector<32x64xf32>
      %cst_18 = arith.constant dense<0.000000e+00> : vector<16x32xf32>
      %31 = tpu.matmul %28, %30, %cst_18 {dimension_numbers = #tpu.dot_dimension_numbers<[1], [1], [0], [0], [0, 0, 1, 0], [], []>} : vector<16x64xf32>, vector<32x64xf32>, vector<16x32xf32> -> vector<16x32xf32>
      %c0_19 = arith.constant 0 : index
      %c0_20 = arith.constant 0 : index
      %32 = vector.load %arg5[%c0_19, %c0_20] : memref<16x4xf32, #tpu.memory_space<vmem>>, vector<16x4xf32>
      %33 = tpu.iota {dimensions = array<i32: 1>} : vector<16x4xi32>
      %34 = vector.broadcast %arg1 : i32 to vector<16x4xi32>
      %35 = arith.cmpi eq, %33, %34 : vector<16x4xi32>
      %cst_21 = arith.constant 0.000000e+00 : f32
      %36 = vector.broadcast %cst_21 : f32 to vector<16x4xf32>
      %37 = arith.select %35, %32, %36 : vector<16x4xi1>, vector<16x4xf32>
      %cst_22 = arith.constant dense<0.000000e+00> : vector<16xf32>
      %38 = vector.multi_reduction <add>, %37, %cst_22 [1] : vector<16x4xf32> to vector<16xf32>
      %39 = vector.shape_cast %38 : vector<16xf32> to vector<16x1xf32>
      %c0_23 = arith.constant 0 : index
      %c0_24 = arith.constant 0 : index
      %40 = vector.load %arg10[%c0_23, %c0_24] : memref<16x32xf32, #tpu.memory_space<vmem>>, vector<16x32xf32>
      %41 = vector.broadcast %39 : vector<16x1xf32> to vector<16x32xf32>
      %42 = arith.mulf %31, %41 : vector<16x32xf32>
      %43 = arith.addf %40, %42 : vector<16x32xf32>
      %c0_25 = arith.constant 0 : index
      %c0_26 = arith.constant 0 : index
      %44 = vector.load %arg10[%c0_25, %c0_26] : memref<16x32xf32, #tpu.memory_space<vmem>>, vector<16x32xf32>
      tpu.vector_store %arg10[%c0_25, %c0_26], %43 {strides = array<i32>} : memref<16x32xf32, #tpu.memory_space<vmem>>, vector<16x32xf32>,
    } else {
    }
    %c3_i32 = arith.constant 3 : i32
    %10 = arith.cmpi eq, %arg1, %c3_i32 : i32
    %c0_i32_4 = arith.constant 0 : i32
    %11 = arith.cmpi eq, %arg2, %c0_i32_4 : i32
    %12 = arith.andi %10, %11 : i1
    %13 = arith.extui %12 : i1 to i32
    %c0_i32_5 = arith.constant 0 : i32
    %14 = arith.cmpi ne, %13, %c0_i32_5 : i32
    scf.if %14 {
      %c0 = arith.constant 0 : index
      %c0_6 = arith.constant 0 : index
      %15 = vector.load %arg10[%c0, %c0_6] : memref<16x32xf32, #tpu.memory_space<vmem>>, vector<16x32xf32>
      %c0_7 = arith.constant 0 : index
      %c0_8 = arith.constant 0 : index
      %16 = vector.load %arg9[%c0_7, %c0_8] : memref<16x32xf32, #tpu.memory_space<vmem>>, vector<16x32xf32>
      tpu.vector_store %arg9[%c0_7, %c0_8], %15 {strides = array<i32>} : memref<16x32xf32, #tpu.memory_space<vmem>>, vector<16x32xf32>,
    } else {
    }
    return
  }
  func.func @transform_0(%arg0: i32, %arg1: i32, %arg2: i32, %arg3: memref<4xi32, #tpu.memory_space<smem>>) -> (i32, i32) {
    %c0_i32 = arith.constant 0 : i32
    %c0_i32_0 = arith.constant 0 : i32
    return %arg0, %c0_i32 : i32, i32
  }
  func.func @transform_1(%arg0: i32, %arg1: i32, %arg2: i32, %arg3: memref<4xi32, #tpu.memory_space<smem>>) -> (i32, i32) {
    %c0_i32 = arith.constant 0 : i32
    %c0_i32_0 = arith.constant 0 : i32
    return %arg0, %c0_i32 : i32, i32
  }
  func.func @transform_2(%arg0: i32, %arg1: i32, %arg2: i32, %arg3: memref<4xi32, #tpu.memory_space<smem>>) -> (i32, i32, i32) {
    %c0_i32 = arith.constant 0 : i32
    %c0_i32_0 = arith.constant 0 : i32
    return %arg1, %arg2, %c0_i32 : i32, i32, i32
  }
  func.func @transform_3(%arg0: i32, %arg1: i32, %arg2: i32, %arg3: memref<4xi32, #tpu.memory_space<smem>>) -> (i32, i32, i32) {
    %c0_i32 = arith.constant 0 : i32
    %c0_i32_0 = arith.constant 0 : i32
    return %arg1, %arg2, %c0_i32 : i32, i32, i32
  }
  func.func @transform_4(%arg0: i32, %arg1: i32, %arg2: i32, %arg3: memref<4xi32, #tpu.memory_space<smem>>) -> (i32, i32, i32) {
    %c0_i32 = arith.constant 0 : i32
    %c0_i32_0 = arith.constant 0 : i32
    return %arg1, %c0_i32, %arg2 : i32, i32, i32
  }
  func.func @transform_5(%arg0: i32, %arg1: i32, %arg2: i32, %arg3: memref<4xi32, #tpu.memory_space<smem>>) -> (i32, i32) {
    %c0_i32 = arith.constant 0 : i32
    %c0_i32_0 = arith.constant 0 : i32
    return %arg0, %c0_i32 : i32, i32
  }
}

</mosaic_0001>

<llo_original>
// kernel: mixtral_sparse_moe_block.1
$region0: #{mixtral_sparse_moe_block.1}
  #allocation0 [shape = 'u32[]', space=smem, size = 0x4, offset = 0x4, fixed_abs, tag = 'smem constant byte address 0x4 - core index']
  #allocation1 [shape = 'u32[144,128]{1,0:T(1,128)}', space=vmem, size = 0x12000, scoped, tag = 'internal scratch']
  #allocation2 [shape = 'f32[16,32]{1,0:T(8,128)}', space=vmem, size = 0x2000, scoped, tag = 'scratch operand']
  #allocation3 [shape = 's32[1]{0}', space=sflag, size = 0x4, scoped, tag = 'scoped memory for mixtral_sparse_moe_block.1']
  #allocation4 [shape = 'u8[512]{0}', space=smem, size = 0x200, scoped, tag = 'prefetched SMEM operand 0']
  %s0 = inlined_call_operand.vmem [shape: s32[4], index: 0, kind: input, shape index: {}]
  %s1 = inlined_call_operand.vmem [shape: f32[16,32], index: 1, kind: input, shape index: {}]
  %s2 = inlined_call_operand.vmem [shape: f32[16,4], index: 2, kind: input, shape index: {}]
  %s3 = inlined_call_operand.vmem [shape: f32[4,64,32], index: 3, kind: input, shape index: {}]
  %s4 = inlined_call_operand.vmem [shape: f32[4,64,32], index: 4, kind: input, shape index: {}]
  %s5 = inlined_call_operand.vmem [shape: f32[4,32,64], index: 5, kind: input, shape index: {}]
  %s6 = inlined_call_operand.hbm [shape: f32[16,32], index: 6, kind: output, shape index: {}]
  %s7 = sld [smem:[#allocation0]]
  $region65: #{mixtral_sparse_moe_block.1} parent=0
    _
  %s9 = ssub.s32 1, %s7
  %s10 = scalar_select 0, %s9, %s7
  %s11 = sshll.u32 %s0, 4
  %s12 = int_to_ptr.vmem [resolvable:$true] %s11
  %14 = dma.vmem_to_smem %s12, 16, [#allocation4], [#allocation3]
  %15 = dma.done [#allocation3], 16
  %16 = sfence
  $region1: #{mixtral_sparse_moe_block.1} parent=0
    #allocation5 [shape = 'u8[8192]{0}', space=vmem, size = 0x2000, scoped, tag = 'output window, operand 0, single buffered']
    #allocation6 [shape = 's32[2]{0}', space=sflag, size = 0x8, scoped, tag = 'scoped memory for mixtral_sparse_moe_block.1']
    %17 = vsyncpa [#allocation6], 0
    loop: start=0, step=1, limit=6
    $region2: #{mixtral_sparse_moe_block.1} parent=1 // loop_pre_header
      _
    $region3: #{mixtral_sparse_moe_block.1} parent=1 // loop_header
      %s19 = sphi 0, %s23
      %p20 = scmp.ge.s32.totalorder %s19, 6
      %s26 = sphi 0, %s45
      %s27 = sphi 0, %s41
      %s28 = sphi 0, %s37
      %s29 = sphi 0, %s26
      %s30 = sphi 0, %s27
      %s31 = sphi 0, %s28
      %s32 = sphi 0, %s29
      %s33 = sphi 0, %s30
      %s34 = sphi 0, %s31
      %s48 = sphi 0, %s50
      %s51 = sphi 0, %s48
      %s52 = sphi 0, %s51
      %s68 = sphi 0, %s52
      %s74 = sphi 0, %s76
      %s77 = sphi 0, %s74
      %s78 = sphi 0, %s77
      %s94 = sphi 0, %s78
      %s102 = sphi 0, %s104
      %s105 = sphi 0, %s102
      %s106 = sphi 0, %s105
      %s122 = sphi 0, %s106
      %s130 = sphi 0, %s132
      %s133 = sphi 0, %s130
      %s134 = sphi 0, %s133
      %s150 = sphi 0, %s134
      %s158 = sphi 0, %s160
      %s161 = sphi 0, %s158
      %s162 = sphi 0, %s161
      %s178 = sphi 0, %s162
      %s184 = sphi 0, %s186
      %s187 = sphi 0, %s184
      %s188 = sphi 0, %s187
      %s204 = sphi 0, %s188
    $region4: #{mixtral_sparse_moe_block.1} parent=1 // loop_header_branch
      %22 = sbr.rel (%p20) target = $region8
    $region5: #{mixtral_sparse_moe_block.1} parent=1 // loop_body
      %s24 = ssub.s32 %s19, 1
      %s25 = ssub.s32 %s19, 2
      %s35 = sadd.s32 1, %s28
      %p36 = scmp.ge.s32.totalorder %s35, 1
      %s37 = scalar_select %p36, 0, %s35
      %s38 = sadd.s32 1, %s27
      %s39 = scalar_select %p36, %s38, %s27
      %p40 = scmp.ge.s32.totalorder %s39, 4
      %s41 = scalar_select %p40, 0, %s39
      %s42 = sadd.s32 1, %s26
      %s43 = scalar_select %p40, %s42, %s26
      %p44 = scmp.ge.s32.totalorder %s43, 1
      %s45 = scalar_select %p44, 0, %s43
      %s46 = ssub.s32 %s26, %s45
      %p47 = scmp.eq.s32.totalorder %s46, 0
      %s49 = sadd.s32 %s48, 1
      %s50 = scalar_select %p47, %s48, %s49
      %p53 = pneg %p47
      %p54 = scmp.eq.s32.totalorder %s19, 3
      %p55 = por %p53, %p54
      %p56 = scmp.ne.s32.totalorder %s48, %s51
      %p57 = scmp.eq.s32.totalorder %s19, 0
      %p58 = por %p56, %p57
      %p59 = scmp.ne.s32.totalorder %s48, %s51
      %p60 = scmp.eq.s32.totalorder %s24, 3
      %p61 = por %p59, %p60
      %p62 = scmp.ne.s32.totalorder %s51, %s52
      %p63 = scmp.eq.s32.totalorder %s24, 0
      %p64 = por %p62, %p63
      %p65 = scmp.ne.s32.totalorder %s51, %s52
      %p66 = scmp.eq.s32.totalorder %s25, 3
      %p67 = por %p65, %p66
      %p69 = scmp.ne.s32.totalorder %s52, %s68
      %p70 = scmp.eq.s32.totalorder %s25, 0
      %p71 = por %p69, %p70
      %s72 = ssub.s32 %s26, %s45
      %p73 = scmp.eq.s32.totalorder %s72, 0
      %s75 = sadd.s32 %s74, 1
      %s76 = scalar_select %p73, %s74, %s75
      %p79 = pneg %p73
      %p80 = scmp.eq.s32.totalorder %s19, 3
      %p81 = por %p79, %p80
      %p82 = scmp.ne.s32.totalorder %s74, %s77
      %p83 = scmp.eq.s32.totalorder %s19, 0
      %p84 = por %p82, %p83
      %p85 = scmp.ne.s32.totalorder %s74, %s77
      %p86 = scmp.eq.s32.totalorder %s24, 3
      %p87 = por %p85, %p86
      %p88 = scmp.ne.s32.totalorder %s77, %s78
      %p89 = scmp.eq.s32.totalorder %s24, 0
      %p90 = por %p88, %p89
      %p91 = scmp.ne.s32.totalorder %s77, %s78
      %p92 = scmp.eq.s32.totalorder %s25, 3
      %p93 = por %p91, %p92
      %p95 = scmp.ne.s32.totalorder %s78, %s94
      %p96 = scmp.eq.s32.totalorder %s25, 0
      %p97 = por %p95, %p96
      %s98 = ssub.s32 %s27, %s41
      %s99 = ssub.s32 %s28, %s37
      %s100 = sor.u32 %s98, %s99
      %p101 = scmp.eq.s32.totalorder %s100, 0
      %s103 = sadd.s32 %s102, 1
      %s104 = scalar_select %p101, %s102, %s103
      %p107 = pneg %p101
      %p108 = scmp.eq.s32.totalorder %s19, 3
      %p109 = por %p107, %p108
      %p110 = scmp.ne.s32.totalorder %s102, %s105
      %p111 = scmp.eq.s32.totalorder %s19, 0
      %p112 = por %p110, %p111
      %p113 = scmp.ne.s32.totalorder %s102, %s105
      %p114 = scmp.eq.s32.totalorder %s24, 3
      %p115 = por %p113, %p114
      %p116 = scmp.ne.s32.totalorder %s105, %s106
      %p117 = scmp.eq.s32.totalorder %s24, 0
      %p118 = por %p116, %p117
      %p119 = scmp.ne.s32.totalorder %s105, %s106
      %p120 = scmp.eq.s32.totalorder %s25, 3
      %p121 = por %p119, %p120
      %p123 = scmp.ne.s32.totalorder %s106, %s122
      %p124 = scmp.eq.s32.totalorder %s25, 0
      %p125 = por %p123, %p124
      %s126 = ssub.s32 %s27, %s41
      %s127 = ssub.s32 %s28, %s37
      %s128 = sor.u32 %s126, %s127
      %p129 = scmp.eq.s32.totalorder %s128, 0
      %s131 = sadd.s32 %s130, 1
      %s132 = scalar_select %p129, %s130, %s131
      %p135 = pneg %p129
      %p136 = scmp.eq.s32.totalorder %s19, 3
      %p137 = por %p135, %p136
      %p138 = scmp.ne.s32.totalorder %s130, %s133
      %p139 = scmp.eq.s32.totalorder %s19, 0
      %p140 = por %p138, %p139
      %p141 = scmp.ne.s32.totalorder %s130, %s133
      %p142 = scmp.eq.s32.totalorder %s24, 3
      %p143 = por %p141, %p142
      %p144 = scmp.ne.s32.totalorder %s133, %s134
      %p145 = scmp.eq.s32.totalorder %s24, 0
      %p146 = por %p144, %p145
      %p147 = scmp.ne.s32.totalorder %s133, %s134
      %p148 = scmp.eq.s32.totalorder %s25, 3
      %p149 = por %p147, %p148
      %p151 = scmp.ne.s32.totalorder %s134, %s150
      %p152 = scmp.eq.s32.totalorder %s25, 0
      %p153 = por %p151, %p152
      %s154 = ssub.s32 %s27, %s41
      %s155 = ssub.s32 %s28, %s37
      %s156 = sor.u32 %s154, %s155
      %p157 = scmp.eq.s32.totalorder %s156, 0
      %s159 = sadd.s32 %s158, 1
      %s160 = scalar_select %p157, %s158, %s159
      %p163 = pneg %p157
      %p164 = scmp.eq.s32.totalorder %s19, 3
      %p165 = por %p163, %p164
      %p166 = scmp.ne.s32.totalorder %s158, %s161
      %p167 = scmp.eq.s32.totalorder %s19, 0
      %p168 = por %p166, %p167
      %p169 = scmp.ne.s32.totalorder %s158, %s161
      %p170 = scmp.eq.s32.totalorder %s24, 3
      %p171 = por %p169, %p170
      %p172 = scmp.ne.s32.totalorder %s161, %s162
      %p173 = scmp.eq.s32.totalorder %s24, 0
      %p174 = por %p172, %p173
      %p175 = scmp.ne.s32.totalorder %s161, %s162
      %p176 = scmp.eq.s32.totalorder %s25, 3
      %p177 = por %p175, %p176
      %p179 = scmp.ne.s32.totalorder %s162, %s178
      %p180 = scmp.eq.s32.totalorder %s25, 0
      %p181 = por %p179, %p180
      %s182 = ssub.s32 %s26, %s45
      %p183 = scmp.eq.s32.totalorder %s182, 0
      %s185 = sadd.s32 %s184, 1
      %s186 = scalar_select %p183, %s184, %s185
      %p189 = pneg %p183
      %p190 = scmp.eq.s32.totalorder %s19, 3
      %p191 = por %p189, %p190
      %p192 = scmp.ne.s32.totalorder %s184, %s187
      %p193 = scmp.eq.s32.totalorder %s19, 0
      %p194 = por %p192, %p193
      %p195 = scmp.ne.s32.totalorder %s184, %s187
      %p196 = scmp.eq.s32.totalorder %s24, 3
      %p197 = por %p195, %p196
      %p198 = scmp.ne.s32.totalorder %s187, %s188
      %p199 = scmp.eq.s32.totalorder %s24, 0
      %p200 = por %p198, %p199
      %p201 = scmp.ne.s32.totalorder %s187, %s188
      %p202 = scmp.eq.s32.totalorder %s25, 3
      %p203 = por %p201, %p202
      %p205 = scmp.ne.s32.totalorder %s188, %s204
      %p206 = scmp.eq.s32.totalorder %s25, 0
      %p207 = por %p205, %p206
      %p208 = scmp.le.s32.totalorder 1, %s19
      %p209 = scmp.lt.s32.totalorder %s19, 5
      %p210 = pnand %p208, %p209
      %p211 = pneg %p210
      // Predicated region
      $region9: #{mixtral_sparse_moe_block.1} parent=5 // pred_check
        _
      $region10: #{mixtral_sparse_moe_block.1} parent=5 // pred_check_branch
        %213 = sbr.rel (%p210) target = $region12
      $region11: #{mixtral_sparse_moe_block.1} parent=5 // pred_region
        %s214 = ssub.s32 %s19, 1
        // Predicated region
        $region13: #{mixtral_sparse_moe_block.1} parent=11 // pred_check
          %p215 = pneg %p64
        $region14: #{mixtral_sparse_moe_block.1} parent=11 // pred_check_branch
          %217 = sbr.rel (%p215) target = $region16
        $region15: #{mixtral_sparse_moe_block.1} parent=11 // pred_region
          %s218 = smul.u32 2, %s29
          %p219 = scmp.lt.s32.totalorder %s218, 1
          %s220 = scalar_select %p219, %s218, 1
          %s221 = smul.addr %s220, 8
          %s222 = scalar_lea.vmem %s1, %s221
          %s223 = smul.u32 2, %s29
        $region16: #{mixtral_sparse_moe_block.1} parent=11 // pred_fallthru
          _
        // Predicated region
        $region17: #{mixtral_sparse_moe_block.1} parent=11 // pred_check
          %p224 = pneg %p90
        $region18: #{mixtral_sparse_moe_block.1} parent=11 // pred_check_branch
          %226 = sbr.rel (%p224) target = $region20
        $region19: #{mixtral_sparse_moe_block.1} parent=11 // pred_region
          %s227 = smul.u32 2, %s29
          %p228 = scmp.lt.s32.totalorder %s227, 1
          %s229 = scalar_select %p228, %s227, 1
          %s230 = smul.addr %s229, 8
          %s231 = scalar_lea.vmem %s2, %s230
          %s232 = smul.u32 2, %s29
        $region20: #{mixtral_sparse_moe_block.1} parent=11 // pred_fallthru
          _
      $region12: #{mixtral_sparse_moe_block.1} parent=5 // pred_fallthru
        _
      %p233 = scmp.lt.s32.totalorder %s19, 4
      // Predicated region
      $region21: #{mixtral_sparse_moe_block.1} parent=5 // pred_check
        %p234 = pneg %p233
      $region22: #{mixtral_sparse_moe_block.1} parent=5 // pred_check_branch
        %236 = sbr.rel (%p234) target = $region24
      $region23: #{mixtral_sparse_moe_block.1} parent=5 // pred_region
        // Predicated region
        $region25: #{mixtral_sparse_moe_block.1} parent=23 // pred_check
          %p237 = pneg %p112
        $region26: #{mixtral_sparse_moe_block.1} parent=23 // pred_check_branch
          %239 = sbr.rel (%p237) target = $region28
        $region27: #{mixtral_sparse_moe_block.1} parent=23 // pred_region
          %s240 = smul.u32 8, %s28
          %p241 = scmp.lt.s32.totalorder %s27, 3
          %s242 = scalar_select %p241, %s27, 3
          %p243 = scmp.lt.s32.totalorder %s240, 7
          %s244 = scalar_select %p243, %s240, 7
          %s245 = smul.addr %s242, 8
          %s246 = sadd.s32 %s244, %s245
          %s247 = smul.addr %s246, 8
          %s248 = scalar_lea.vmem %s3, %s247
          %s249 = smul.u32 8, %s28
        $region28: #{mixtral_sparse_moe_block.1} parent=23 // pred_fallthru
          _
        // Predicated region
        $region29: #{mixtral_sparse_moe_block.1} parent=23 // pred_check
          %p250 = pneg %p140
        $region30: #{mixtral_sparse_moe_block.1} parent=23 // pred_check_branch
          %252 = sbr.rel (%p250) target = $region32
        $region31: #{mixtral_sparse_moe_block.1} parent=23 // pred_region
          %s253 = smul.u32 8, %s28
          %p254 = scmp.lt.s32.totalorder %s27, 3
          %s255 = scalar_select %p254, %s27, 3
          %p256 = scmp.lt.s32.totalorder %s253, 7
          %s257 = scalar_select %p256, %s253, 7
          %s258 = smul.addr %s255, 8
          %s259 = sadd.s32 %s257, %s258
          %s260 = smul.addr %s259, 8
          %s261 = scalar_lea.vmem %s4, %s260
          %s262 = smul.u32 8, %s28
        $region32: #{mixtral_sparse_moe_block.1} parent=23 // pred_fallthru
          _
        // Predicated region
        $region33: #{mixtral_sparse_moe_block.1} parent=23 // pred_check
          %p263 = pneg %p168
        $region34: #{mixtral_sparse_moe_block.1} parent=23 // pred_check_branch
          %265 = sbr.rel (%p263) target = $region36
        $region35: #{mixtral_sparse_moe_block.1} parent=23 // pred_region
          %p266 = scmp.lt.s32.totalorder %s27, 3
          %s267 = scalar_select %p266, %s27, 3
          %p268 = scmp.lt.s32.totalorder %s28, 0
          %s269 = scalar_select %p268, %s28, 0
          %s270 = smul.addr %s267, 4
          %s271 = sadd.s32 %s269, %s270
          %s272 = smul.addr %s271, 8
          %s273 = scalar_lea.vmem %s5, %s272
        $region36: #{mixtral_sparse_moe_block.1} parent=23 // pred_fallthru
          _
      $region24: #{mixtral_sparse_moe_block.1} parent=5 // pred_fallthru
        _
      %p274 = scmp.le.s32.totalorder 1, %s19
      %p275 = scmp.lt.s32.totalorder %s19, 5
      %p276 = pnand %p274, %p275
      %p277 = pneg %p276
      // Predicated region
      $region37: #{mixtral_sparse_moe_block.1} parent=5 // pred_check
        _
      $region38: #{mixtral_sparse_moe_block.1} parent=5 // pred_check_branch
        %279 = sbr.rel (%p276) target = $region40
      $region39: #{mixtral_sparse_moe_block.1} parent=5 // pred_region
        %s280 = ssub.s32 %s19, 1
        %s281 = smul.u32 2, %s29
        %p282 = scmp.lt.s32.totalorder %s281, 1
        %s283 = scalar_select %p282, %s281, 1
        %s284 = smul.addr %s283, 8
        %s285 = scalar_lea.vmem %s1, %s284
        %p286 = pneg %p64
        %p287 = pneg %p61
        %s288 = smul.u32 2, %s29
        %p289 = scmp.lt.s32.totalorder %s288, 1
        %s290 = scalar_select %p289, %s288, 1
        %s291 = smul.addr %s290, 8
        %s292 = scalar_lea.vmem %s2, %s291
        %p293 = pneg %p90
        %p294 = pneg %p87
        %s295 = smul.u32 8, %s31
        %p296 = scmp.lt.s32.totalorder %s30, 3
        %s297 = scalar_select %p296, %s30, 3
        %p298 = scmp.lt.s32.totalorder %s295, 7
        %s299 = scalar_select %p298, %s295, 7
        %s300 = smul.addr %s297, 8
        %s301 = sadd.s32 %s299, %s300
        %s302 = smul.addr %s301, 8
        %s303 = scalar_lea.vmem %s3, %s302
        %p304 = pneg %p118
        %p305 = pneg %p115
        %s306 = smul.u32 8, %s31
        %p307 = scmp.lt.s32.totalorder %s30, 3
        %s308 = scalar_select %p307, %s30, 3
        %p309 = scmp.lt.s32.totalorder %s306, 7
        %s310 = scalar_select %p309, %s306, 7
        %s311 = smul.addr %s308, 8
        %s312 = sadd.s32 %s310, %s311
        %s313 = smul.addr %s312, 8
        %s314 = scalar_lea.vmem %s4, %s313
        %p315 = pneg %p146
        %p316 = pneg %p143
        %p317 = scmp.lt.s32.totalorder %s30, 3
        %s318 = scalar_select %p317, %s30, 3
        %p319 = scmp.lt.s32.totalorder %s31, 0
        %s320 = scalar_select %p319, %s31, 0
        %s321 = smul.addr %s318, 4
        %s322 = sadd.s32 %s320, %s321
        %s323 = smul.addr %s322, 8
        %s324 = scalar_lea.vmem %s5, %s323
        %p325 = pneg %p174
        %p326 = pneg %p171
        %p327 = pneg %p200
        %p328 = pneg %p197
        %s329 = smul.u32 2, %s29
        %p330 = scmp.lt.s32.totalorder %s329, 1
        %s331 = scalar_select %p330, %s329, 1
        %s332 = smul.addr %s331, 8
        %s333 = scalar_lea.vmem %s1, %s332
        %s334 = smul.u32 2, %s29
        %s335 = smul.u32 2, %s29
        %p336 = scmp.lt.s32.totalorder %s335, 1
        %s337 = scalar_select %p336, %s335, 1
        %s338 = smul.addr %s337, 8
        %s339 = scalar_lea.vmem %s2, %s338
        %s340 = smul.u32 2, %s29
        %s341 = smul.u32 8, %s31
        %p342 = scmp.lt.s32.totalorder %s30, 3
        %s343 = scalar_select %p342, %s30, 3
        %p344 = scmp.lt.s32.totalorder %s341, 7
        %s345 = scalar_select %p344, %s341, 7
        %s346 = smul.addr %s343, 8
        %s347 = sadd.s32 %s345, %s346
        %s348 = smul.addr %s347, 8
        %s349 = scalar_lea.vmem %s3, %s348
        %s350 = smul.u32 8, %s31
        %s351 = smul.u32 8, %s31
        %p352 = scmp.lt.s32.totalorder %s30, 3
        %s353 = scalar_select %p352, %s30, 3
        %p354 = scmp.lt.s32.totalorder %s351, 7
        %s355 = scalar_select %p354, %s351, 7
        %s356 = smul.addr %s353, 8
        %s357 = sadd.s32 %s355, %s356
        %s358 = smul.addr %s357, 8
        %s359 = scalar_lea.vmem %s4, %s358
        %s360 = smul.u32 8, %s31
        %p361 = scmp.lt.s32.totalorder %s30, 3
        %s362 = scalar_select %p361, %s30, 3
        %p363 = scmp.lt.s32.totalorder %s31, 0
        %s364 = scalar_select %p363, %s31, 0
        %s365 = smul.addr %s362, 4
        %s366 = sadd.s32 %s364, %s365
        %s367 = smul.addr %s366, 8
        %s368 = scalar_lea.vmem %s5, %s367
        %s369 = smul.u32 2, %s29
        %p370 = scmp.eq.s32.totalorder %s30, 0
        %p371 = scmp.eq.s32.totalorder %s31, 0
        %p372 = pnand %p370, %p371
        %p373 = pneg %p372
        // Predicated region
        $region41: #{mixtral_sparse_moe_block.1} parent=39 // pred_check
          _
        $region42: #{mixtral_sparse_moe_block.1} parent=39 // pred_check_branch
          %375 = sbr.rel (%p372) target = $region44
        $region43: #{mixtral_sparse_moe_block.1} parent=39 // pred_region
          %vm376 = vcmask 261120
          %377 = vst.msk [vmem:[#allocation2] sm:$0xff] %vm376, 0.0
          %378 = vst.msk [vmem:[#allocation2 + $0x8] sm:$0xff] %vm376, 0.0
        $region44: #{mixtral_sparse_moe_block.1} parent=39 // pred_fallthru
          _
        %s379 = sld [smem:[#allocation4 + %s30]]
        %p380 = scmp.gt.s32.totalorder %s379, 0
        // Predicated region
        $region45: #{mixtral_sparse_moe_block.1} parent=39 // pred_check
          %p381 = pneg %p380
        $region46: #{mixtral_sparse_moe_block.1} parent=39 // pred_check_branch
          %383 = sbr.rel (%p381) target = $region48
        $region47: #{mixtral_sparse_moe_block.1} parent=39 // pred_region
          %v384 = vld [vmem:[%s333] sm:$0xff]
          %v385 = vld [vmem:[%s333 + $0x8] sm:$0xff]
          %v386 = vld [vmem:[%s349] sm:$0xff]
          %v387 = vld [vmem:[%s349 + $0x8] sm:$0xff]
          %v388 = vld [vmem:[%s349 + $0x10] sm:$0xff]
          %v389 = vld [vmem:[%s349 + $0x18] sm:$0xff]
          %v390 = vld [vmem:[%s349 + $0x20] sm:$0xff]
          %v391 = vld [vmem:[%s349 + $0x28] sm:$0xff]
          %v392 = vld [vmem:[%s349 + $0x30] sm:$0xff]
          %v393 = vld [vmem:[%s349 + $0x38] sm:$0xff]
          %vm394 = vcmask 261120
          %v396 = vsel %vm394, %v384, 0
          %v399 = vsel %vm394, %v385, 0
          %v402 = vsel %vm394, %v386, 0
          %v405 = vsel %vm394, %v387, 0
          %v408 = vsel %vm394, %v388, 0
          %v411 = vsel %vm394, %v389, 0
          %v414 = vsel %vm394, %v390, 0
          %v417 = vsel %vm394, %v391, 0
          %v420 = vsel %vm394, %v392, 0
          %v423 = vsel %vm394, %v393, 0
          %425 = vmatprep.subr.mxu0 0.0
          %426 = vmatpush1.xpose.msra.mxu0 %v402
          %427 = vmatprep.subr.mxu0 0.0
          %428 = vmatpush1.xpose.msra.mxu0 %v405
          %429 = vmatprep.subr.mxu0 0.0
          %430 = vmatpush1.xpose.msra.mxu0 %v408
          %431 = vmatprep.subr.mxu0 0.0
          %432 = vmatpush1.xpose.msra.mxu0 %v411
          %433 = vmatprep.subr.mxu0 0.0
          %434 = vmatpush1.xpose.msra.mxu0 %v414
          %435 = vmatprep.subr.mxu0 0.0
          %436 = vmatpush1.xpose.msra.mxu0 %v417
          %437 = vmatprep.subr.mxu0 0.0
          %438 = vmatpush1.xpose.msra.mxu0 %v420
          %439 = vmatprep.subr.mxu0 0.0
          %440 = vmatpush1.xpose.msra.mxu0 %v423
          %441 = vmatprep.subr.mxu0 0.0
          %442 = vmatpush1.xpose.msra.mxu0 0.0
          %443 = vmatprep.subr.mxu0 0.0
          %444 = vmatpush1.xpose.msra.mxu0 0.0
          %445 = vmatprep.subr.mxu0 0.0
          %446 = vmatpush1.xpose.msra.mxu0 0.0
          %447 = vmatprep.subr.mxu0 0.0
          %448 = vmatpush1.xpose.msra.mxu0 0.0
          %449 = vmatprep.subr.mxu0 0.0
          %450 = vmatpush1.xpose.msra.mxu0 0.0
          %451 = vmatprep.subr.mxu0 0.0
          %452 = vmatpush1.xpose.msra.mxu0 0.0
          %453 = vmatprep.subr.mxu0 0.0
          %454 = vmatpush1.xpose.msra.mxu0 0.0
          %455 = vmatprep.subr.mxu0 0.0
          %456 = vmatpush1.xpose.msra.mxu0 0.0
          %457 = vmatprep.subr.mxu0 0.0
          %458 = vmatpush1.xpose.msra.mxu0 0.0
          %459 = vmatprep.subr.mxu0 0.0
          %460 = vmatpush1.xpose.msra.mxu0 0.0
          %461 = vmatprep.subr.mxu0 0.0
          %462 = vmatpush1.xpose.msra.mxu0 0.0
          %463 = vmatprep.subr.mxu0 0.0
          %464 = vmatpush1.xpose.msra.mxu0 0.0
          %465 = vmatprep.subr.mxu0 0.0
          %466 = vmatpush1.xpose.msra.mxu0 0.0
          %467 = vmatprep.subr.mxu0 0.0
          %468 = vmatpush1.xpose.msra.mxu0 0.0
          %469 = vmatprep.subr.mxu0 0.0
          %470 = vmatpush1.xpose.msra.mxu0 0.0
          %471 = vmatprep.subr.mxu0 0.0
          %472 = vmatpush1.xpose.msra.mxu0 0.0
          %473 = vmatprep.subr.mxu0 0.0
          %474 = vmatpush1.xpose.msra.mxu0 0.0
          %475 = vmatprep.subr.mxu0 0.0
          %476 = vmatpush1.xpose.msra.mxu0 0.0
          %477 = vmatprep.subr.mxu0 0.0
          %478 = vmatpush1.xpose.msra.mxu0 0.0
          %479 = vmatprep.subr.mxu0 0.0
          %480 = vmatpush1.xpose.msra.mxu0 0.0
          %481 = vmatprep.subr.mxu0 0.0
          %482 = vmatpush1.xpose.msra.mxu0 0.0
          %483 = vmatprep.subr.mxu0 0.0
          %484 = vmatpush1.xpose.msra.mxu0 0.0
          %485 = vmatprep.subr.mxu0 0.0
          %486 = vmatpush1.xpose.msra.mxu0 0.0
          %487 = vmatprep.subr.mxu0 0.0
          %488 = vmatpush1.xpose.msra.mxu0 0.0
          %489 = vmatprep.mubr.f32.mxu0 0.0
          %490 = vmatmul.mubr.f32.gmra.mrb[0].mxu0 %v396
          %v491 = vpop.f32.mrb[0].mxu0
          %v492 = vadd.f32 0.0, %v491
          %v493 = vpop.f32.mrb[0].mxu0
          %494 = vmatprep.mubr.f32.mxu0 0.0
          %495 = vmatmul.mubr.f32.gmra.mrb[0].mxu0 %v399
          %v496 = vpop.f32.mrb[0].mxu0
          %v497 = vadd.f32 0.0, %v496
          %v498 = vpop.f32.mrb[0].mxu0
          %499 = vdwg.mxu0
          %v500 = vld [vmem:[%s359] sm:$0xff]
          %v501 = vld [vmem:[%s359 + $0x8] sm:$0xff]
          %v502 = vld [vmem:[%s359 + $0x10] sm:$0xff]
          %v503 = vld [vmem:[%s359 + $0x18] sm:$0xff]
          %v504 = vld [vmem:[%s359 + $0x20] sm:$0xff]
          %v505 = vld [vmem:[%s359 + $0x28] sm:$0xff]
          %v506 = vld [vmem:[%s359 + $0x30] sm:$0xff]
          %v507 = vld [vmem:[%s359 + $0x38] sm:$0xff]
          %v509 = vsel %vm394, %v500, 0
          %v512 = vsel %vm394, %v501, 0
          %v515 = vsel %vm394, %v502, 0
          %v518 = vsel %vm394, %v503, 0
          %v521 = vsel %vm394, %v504, 0
          %v524 = vsel %vm394, %v505, 0
          %v527 = vsel %vm394, %v506, 0
          %v530 = vsel %vm394, %v507, 0
          %532 = vmatprep.subr.mxu0 0.0
          %533 = vmatpush1.xpose.msra.mxu0 %v509
          %534 = vmatprep.subr.mxu0 0.0
          %535 = vmatpush1.xpose.msra.mxu0 %v512
          %536 = vmatprep.subr.mxu0 0.0
          %537 = vmatpush1.xpose.msra.mxu0 %v515
          %538 = vmatprep.subr.mxu0 0.0
          %539 = vmatpush1.xpose.msra.mxu0 %v518
          %540 = vmatprep.subr.mxu0 0.0
          %541 = vmatpush1.xpose.msra.mxu0 %v521
          %542 = vmatprep.subr.mxu0 0.0
          %543 = vmatpush1.xpose.msra.mxu0 %v524
          %544 = vmatprep.subr.mxu0 0.0
          %545 = vmatpush1.xpose.msra.mxu0 %v527
          %546 = vmatprep.subr.mxu0 0.0
          %547 = vmatpush1.xpose.msra.mxu0 %v530
          %548 = vmatprep.subr.mxu0 0.0
          %549 = vmatpush1.xpose.msra.mxu0 0.0
          %550 = vmatprep.subr.mxu0 0.0
          %551 = vmatpush1.xpose.msra.mxu0 0.0
          %552 = vmatprep.subr.mxu0 0.0
          %553 = vmatpush1.xpose.msra.mxu0 0.0
          %554 = vmatprep.subr.mxu0 0.0
          %555 = vmatpush1.xpose.msra.mxu0 0.0
          %556 = vmatprep.subr.mxu0 0.0
          %557 = vmatpush1.xpose.msra.mxu0 0.0
          %558 = vmatprep.subr.mxu0 0.0
          %559 = vmatpush1.xpose.msra.mxu0 0.0
          %560 = vmatprep.subr.mxu0 0.0
          %561 = vmatpush1.xpose.msra.mxu0 0.0
          %562 = vmatprep.subr.mxu0 0.0
          %563 = vmatpush1.xpose.msra.mxu0 0.0
          %564 = vmatprep.subr.mxu0 0.0
          %565 = vmatpush1.xpose.msra.mxu0 0.0
          %566 = vmatprep.subr.mxu0 0.0
          %567 = vmatpush1.xpose.msra.mxu0 0.0
          %568 = vmatprep.subr.mxu0 0.0
          %569 = vmatpush1.xpose.msra.mxu0 0.0
          %570 = vmatprep.subr.mxu0 0.0
          %571 = vmatpush1.xpose.msra.mxu0 0.0
          %572 = vmatprep.subr.mxu0 0.0
          %573 = vmatpush1.xpose.msra.mxu0 0.0
          %574 = vmatprep.subr.mxu0 0.0
          %575 = vmatpush1.xpose.msra.mxu0 0.0
          %576 = vmatprep.subr.mxu0 0.0
          %577 = vmatpush1.xpose.msra.mxu0 0.0
          %578 = vmatprep.subr.mxu0 0.0
          %579 = vmatpush1.xpose.msra.mxu0 0.0
          %580 = vmatprep.subr.mxu0 0.0
          %581 = vmatpush1.xpose.msra.mxu0 0.0
          %582 = vmatprep.subr.mxu0 0.0
          %583 = vmatpush1.xpose.msra.mxu0 0.0
          %584 = vmatprep.subr.mxu0 0.0
          %585 = vmatpush1.xpose.msra.mxu0 0.0
          %586 = vmatprep.subr.mxu0 0.0
          %587 = vmatpush1.xpose.msra.mxu0 0.0
          %588 = vmatprep.subr.mxu0 0.0
          %589 = vmatpush1.xpose.msra.mxu0 0.0
          %590 = vmatprep.subr.mxu0 0.0
          %591 = vmatpush1.xpose.msra.mxu0 0.0
          %592 = vmatprep.subr.mxu0 0.0
          %593 = vmatpush1.xpose.msra.mxu0 0.0
          %594 = vmatprep.subr.mxu0 0.0
          %595 = vmatpush1.xpose.msra.mxu0 0.0
          %596 = vmatprep.mubr.f32.mxu0 0.0
          %597 = vmatmul.mubr.f32.gmra.mrb[0].mxu0 %v396
          %v598 = vpop.f32.mrb[0].mxu0
          %v599 = vadd.f32 0.0, %v598
          %v600 = vpop.f32.mrb[0].mxu0
          %601 = vmatprep.mubr.f32.mxu0 0.0
          %602 = vmatmul.mubr.f32.gmra.mrb[0].mxu0 %v399
          %v603 = vpop.f32.mrb[0].mxu0
          %v604 = vadd.f32 0.0, %v603
          %v605 = vpop.f32.mrb[0].mxu0
          %606 = vdwg.mxu0
          %v607 = vxor.u32 %v492, 2147483648
          %v608 = vxor.u32 %v497, 2147483648
          %v609 = vmul.f32 %v607, 1.442695
          %v610 = vpow.pop %v609
          %v611 = vmul.f32 %v608, 1.442695
          %v612 = vpow.pop %v611
          %v613 = vadd.f32 %v610, 1.0
          %v614 = vadd.f32 %v612, 1.0
          %v615 = vrcp.pop %v613
          %v616 = vmul.f32 1.0, %v615
          %v617 = vrcp.pop %v614
          %v618 = vmul.f32 1.0, %v617
          %v619 = vmul.f32 %v492, %v616
          %v620 = vmul.f32 %v497, %v618
          %v621 = vmul.f32 %v619, %v599
          %v622 = vmul.f32 %v620, %v604
          %v623 = vld [vmem:[%s368] sm:$0xff]
          %v624 = vld [vmem:[%s368 + $0x8] sm:$0xff]
          %v625 = vld [vmem:[%s368 + $0x10] sm:$0xff]
          %v626 = vld [vmem:[%s368 + $0x18] sm:$0xff]
          %vm627 = vcmask 523264
          %v629 = vsel %vm627, %v621, 0
          %v632 = vsel %vm627, %v622, 0
          %v635 = vsel %vm627, %v623, 0
          %v638 = vsel %vm627, %v624, 0
          %v641 = vsel %vm627, %v625, 0
          %v644 = vsel %vm627, %v626, 0
          %646 = vmatprep.subr.mxu0 0.0
          %647 = vmatpush1.xpose.msra.mxu0 %v635
          %648 = vmatprep.subr.mxu0 0.0
          %649 = vmatpush1.xpose.msra.mxu0 %v638
          %650 = vmatprep.subr.mxu0 0.0
          %651 = vmatpush1.xpose.msra.mxu0 %v641
          %652 = vmatprep.subr.mxu0 0.0
          %653 = vmatpush1.xpose.msra.mxu0 %v644
          %654 = vmatprep.subr.mxu0 0.0
          %655 = vmatpush1.xpose.msra.mxu0 0.0
          %656 = vmatprep.subr.mxu0 0.0
          %657 = vmatpush1.xpose.msra.mxu0 0.0
          %658 = vmatprep.subr.mxu0 0.0
          %659 = vmatpush1.xpose.msra.mxu0 0.0
          %660 = vmatprep.subr.mxu0 0.0
          %661 = vmatpush1.xpose.msra.mxu0 0.0
          %662 = vmatprep.subr.mxu0 0.0
          %663 = vmatpush1.xpose.msra.mxu0 0.0
          %664 = vmatprep.subr.mxu0 0.0
          %665 = vmatpush1.xpose.msra.mxu0 0.0
          %666 = vmatprep.subr.mxu0 0.0
          %667 = vmatpush1.xpose.msra.mxu0 0.0
          %668 = vmatprep.subr.mxu0 0.0
          %669 = vmatpush1.xpose.msra.mxu0 0.0
          %670 = vmatprep.subr.mxu0 0.0
          %671 = vmatpush1.xpose.msra.mxu0 0.0
          %672 = vmatprep.subr.mxu0 0.0
          %673 = vmatpush1.xpose.msra.mxu0 0.0
          %674 = vmatprep.subr.mxu0 0.0
          %675 = vmatpush1.xpose.msra.mxu0 0.0
          %676 = vmatprep.subr.mxu0 0.0
          %677 = vmatpush1.xpose.msra.mxu0 0.0
          %678 = vmatprep.subr.mxu0 0.0
          %679 = vmatpush1.xpose.msra.mxu0 0.0
          %680 = vmatprep.subr.mxu0 0.0
          %681 = vmatpush1.xpose.msra.mxu0 0.0
          %682 = vmatprep.subr.mxu0 0.0
          %683 = vmatpush1.xpose.msra.mxu0 0.0
          %684 = vmatprep.subr.mxu0 0.0
          %685 = vmatpush1.xpose.msra.mxu0 0.0
          %686 = vmatprep.subr.mxu0 0.0
          %687 = vmatpush1.xpose.msra.mxu0 0.0
          %688 = vmatprep.subr.mxu0 0.0
          %689 = vmatpush1.xpose.msra.mxu0 0.0
          %690 = vmatprep.subr.mxu0 0.0
          %691 = vmatpush1.xpose.msra.mxu0 0.0
          %692 = vmatprep.subr.mxu0 0.0
          %693 = vmatpush1.xpose.msra.mxu0 0.0
          %694 = vmatprep.subr.mxu0 0.0
          %695 = vmatpush1.xpose.msra.mxu0 0.0
          %696 = vmatprep.subr.mxu0 0.0
          %697 = vmatpush1.xpose.msra.mxu0 0.0
          %698 = vmatprep.subr.mxu0 0.0
          %699 = vmatpush1.xpose.msra.mxu0 0.0
          %700 = vmatprep.subr.mxu0 0.0
          %701 = vmatpush1.xpose.msra.mxu0 0.0
          %702 = vmatprep.subr.mxu0 0.0
          %703 = vmatpush1.xpose.msra.mxu0 0.0
          %704 = vmatprep.subr.mxu0 0.0
          %705 = vmatpush1.xpose.msra.mxu0 0.0
          %706 = vmatprep.subr.mxu0 0.0
          %707 = vmatpush1.xpose.msra.mxu0 0.0
          %708 = vmatprep.subr.mxu0 0.0
          %709 = vmatpush1.xpose.msra.mxu0 0.0
          %710 = vmatprep.mubr.f32.mxu0 0.0
          %711 = vmatmul.mubr.f32.gmra.mrb[0].mxu0 %v629
          %v712 = vpop.f32.mrb[0].mxu0
          %v713 = vadd.f32 0.0, %v712
          %v714 = vpop.f32.mrb[0].mxu0
          %715 = vmatprep.mubr.f32.mxu0 0.0
          %716 = vmatmul.mubr.f32.gmra.mrb[0].mxu0 %v632
          %v717 = vpop.f32.mrb[0].mxu0
          %v718 = vadd.f32 0.0, %v717
          %v719 = vpop.f32.mrb[0].mxu0
          %720 = vdwg.mxu0
          %v721 = vld [vmem:[%s339] sm:$0xff]
          %v722 = vld [vmem:[%s339 + $0x8] sm:$0xff]
          %v723 = vlaneseq
          %v724 = vand.u32 %v723, 127
          %v725 = vstv %s30
          %vm726 = vcmp.eq.s32.totalorder %v724, %v725
          %v727 = vsel %vm726, %v721, 0.0
          %v728 = vsel %vm726, %v722, 0.0
          %vm729 = vcmask 31744
          %v730 = vsel %vm729, %v727, 0.0
          %731 = vadd.xlane.f32.xlu0 %v730
          %v732 = vpop.xlane.xlu0 %731
          %v733 = vsel %vm729, %v728, 0.0
          %734 = vadd.xlane.f32.xlu0 %v733
          %v735 = vpop.xlane.xlu0 %734
          %v736 = vld [vmem:[#allocation2] sm:$0xff]
          %v737 = vld [vmem:[#allocation2 + $0x8] sm:$0xff]
          %v738 = vmul.f32 %v713, %v732
          %v739 = vmul.f32 %v718, %v735
          %v740 = vadd.f32 %v736, %v738
          %v741 = vadd.f32 %v737, %v739
          %742 = vst.msk [vmem:[#allocation2] sm:$0xff] %vm394, %v740
          %743 = vst.msk [vmem:[#allocation2 + $0x8] sm:$0xff] %vm394, %v741
        $region48: #{mixtral_sparse_moe_block.1} parent=39 // pred_fallthru
          _
        %p744 = scmp.eq.s32.totalorder %s30, 3
        %p745 = pnand %p744, %p371
        %p746 = pneg %p745
        // Predicated region
        $region49: #{mixtral_sparse_moe_block.1} parent=39 // pred_check
          _
        $region50: #{mixtral_sparse_moe_block.1} parent=39 // pred_check_branch
          %748 = sbr.rel (%p745) target = $region52
        $region51: #{mixtral_sparse_moe_block.1} parent=39 // pred_region
          %v749 = vld [vmem:[#allocation2] sm:$0xff]
          %v750 = vld [vmem:[#allocation2 + $0x8] sm:$0xff]
          %vm751 = vcmask 261120
          %752 = vst.msk [vmem:[#allocation5] sm:$0xff] %vm751, %v749
          %753 = vst.msk [vmem:[#allocation5 + $0x8] sm:$0xff] %vm751, %v750
        $region52: #{mixtral_sparse_moe_block.1} parent=39 // pred_fallthru
          _
        // Predicated region
        $region53: #{mixtral_sparse_moe_block.1} parent=39 // pred_check
          %p754 = pneg %p197
        $region54: #{mixtral_sparse_moe_block.1} parent=39 // pred_check_branch
          %756 = sbr.rel (%p754) target = $region56
        $region55: #{mixtral_sparse_moe_block.1} parent=39 // pred_region
          %s757 = smul.u32 2, %s29
          %s759 = ssub.s32 256, 256
          %760 = vsyncadd [#allocation6], %s759
          %s761 = smul.addr %s757, 128
          %s762 = scalar_lea.hbm %s6, %s761
          %s763 = sshll.u32 [#allocation5], 4
          %s764 = int_to_ptr.vmem [resolvable:$true] %s763
          %769 = dma.vmem_to_hbm [thread:$0]  %s764, 256, %s762, [#allocation6], 128, 128, 8
        $region56: #{mixtral_sparse_moe_block.1} parent=39 // pred_fallthru
          _
        // Predicated region
        $region57: #{mixtral_sparse_moe_block.1} parent=39 // pred_check
          %p770 = pneg %p197
        $region58: #{mixtral_sparse_moe_block.1} parent=39 // pred_check_branch
          %772 = sbr.rel (%p770) target = $region60
        $region59: #{mixtral_sparse_moe_block.1} parent=39 // pred_region
          %773 = dma.done [#allocation6], 256
        $region60: #{mixtral_sparse_moe_block.1} parent=39 // pred_fallthru
          _
      $region40: #{mixtral_sparse_moe_block.1} parent=5 // pred_fallthru
        _
      %p774 = scmp.le.s32.totalorder 2, %s19
      // Predicated region
      $region61: #{mixtral_sparse_moe_block.1} parent=5 // pred_check
        %p775 = pneg %p774
      $region62: #{mixtral_sparse_moe_block.1} parent=5 // pred_check_branch
        %777 = sbr.rel (%p775) target = $region64
      $region63: #{mixtral_sparse_moe_block.1} parent=5 // pred_region
        %s778 = ssub.s32 %s19, 2
      $region64: #{mixtral_sparse_moe_block.1} parent=5 // pred_fallthru
        _
    $region6: #{mixtral_sparse_moe_block.1} parent=1 // loop_footer
      %s23 = sadd.s32 1, %s19
    $region7: #{mixtral_sparse_moe_block.1} parent=1 // loop_footer_branch
      %18 = sbr.rel target = $region3
    $region8: #{mixtral_sparse_moe_block.1} parent=1 // loop_exit
      _
    %779 = vsyncpa [#allocation6], 1
    %s780 = scalar_lea.sflag [#allocation6], 1
    %781 = vsyncpa %s780, 1

</llo_original>
